<compile_context>
chip_gen: v7x
topology: tpu7x:2x2x1
jax: 0.10.0
libtpu: 0.0.40
codegen_flags: <defaults>
</compile_context>

<pallas_src>
import functools

import jax
import jax.numpy as jnp
from jax import lax
from jax.experimental import pallas as pl
from jax.experimental.pallas import tpu as pltpu

EPS = 1e-5


def _vmem_capacity_bytes():
    try:
        info = pltpu.get_tpu_info()
        for name in ("vmem_capacity_bytes", "vmem_bytes", "vmem_size_bytes"):
            cap = getattr(info, name, None)
            if cap:
                return int(cap)
    except Exception:
        pass
    return 64 << 20  # conservative default (v7x per-TC VMEM)


def _round_up(v, m):
    return ((v + m - 1) // m) * m


def _round_down(v, m):
    return max(m, (v // m) * m)


def _sublane_pack(dtype):
    return {4: 8, 2: 16, 1: 32}.get(jnp.dtype(dtype).itemsize, 8)


# ----------------------------- kernels ------------------------------------- #


def _bn_fast_kernel(x_ref, gamma_ref, beta_ref, o_ref, *, inv_count, eps):
    # Whole (N, tc) channel slab resident in VMEM: exact centered statistics.
    # x is re-read/cast from VMEM per use (cheap) instead of keeping one large
    # f32 temporary live across reductions and the final FMA.
    mean = jnp.sum(x_ref[...].astype(jnp.float32), axis=0, keepdims=True) * inv_count
    d = x_ref[...].astype(jnp.float32) - mean
    var = jnp.sum(d * d, axis=0, keepdims=True) * inv_count
    a = gamma_ref[...].astype(jnp.float32) * lax.rsqrt(var + eps)
    b = beta_ref[...].astype(jnp.float32) - mean * a
    o_ref[...] = (x_ref[...].astype(jnp.float32) * a + b).astype(o_ref.dtype)


def _bn_stats_kernel(x_ref, gamma_ref, beta_ref, a_ref, b_ref,
                     mean_scr, m2_scr, *, n_rows, tn, inv_count, eps, ragged):
    # grid = (channel_tiles, row_tiles); row axis is "arbitrary" (accumulate).
    n = pl.program_id(1)
    nt = pl.num_programs(1)

    @pl.when(n == 0)
    def _init():
        mean_scr[...] = jnp.zeros_like(mean_scr)
        m2_scr[...] = jnp.zeros_like(m2_scr)

    xf = x_ref[...].astype(jnp.float32)
    if ragged:
        cnt_i = jnp.minimum(n_rows - n * tn, tn)
        cnt = cnt_i.astype(jnp.float32)
        row_ids = lax.broadcasted_iota(jnp.int32, x_ref.shape, 0)
        mask = row_ids < cnt_i
        xs = jnp.where(mask, xf, 0.0)
        mean_t = jnp.sum(xs, axis=0, keepdims=True) / cnt
        d = jnp.where(mask, xf - mean_t, 0.0)
    else:
        cnt = float(tn)
        mean_t = jnp.sum(xf, axis=0, keepdims=True) * (1.0 / tn)
        d = xf - mean_t
    m2_t = jnp.sum(d * d, axis=0, keepdims=True)

    # Chan's parallel-variance merge of this tile into the running stats
    # (avoids E[x^2] - mean^2 catastrophic cancellation for large N).
    cnt_run = (n * tn).astype(jnp.float32)
    tot = cnt_run + cnt
    delta = mean_t - mean_scr[...]
    mean_scr[...] = mean_scr[...] + delta * (cnt / tot)
    m2_scr[...] = m2_scr[...] + m2_t + (delta * delta) * (cnt_run * cnt / tot)

    @pl.when(n == nt - 1)
    def _finalize():
        var = m2_scr[...] * inv_count
        a = gamma_ref[...].astype(jnp.float32) * lax.rsqrt(var + eps)
        a_ref[...] = a
        b_ref[...] = beta_ref[...].astype(jnp.float32) - mean_scr[...] * a


def _bn_apply_kernel(x_ref, a_ref, b_ref, o_ref):
    # Fused per-channel scale/shift; cast only at the store.
    o_ref[...] = (x_ref[...].astype(jnp.float32) * a_ref[...]
                  + b_ref[...]).astype(o_ref.dtype)


# ----------------------------- wrapper -------------------------------------- #


def batch_norm_temporal_1d(x, gamma, beta, *, eps=EPS,
                           force_streaming=False, tn_override=None,
                           tc_override=None):
    """x: (B, L, C); gamma, beta: (C,). Returns (B, L, C)."""
    B, L, C = x.shape
    if B == 1:
        # The PyTorch module returns the input unchanged when batch == 1.
        return x

    N = B * L
    inv_count = 1.0 / float(N)
    x2 = x.reshape(N, C)
    g2 = gamma.reshape(1, C).astype(jnp.float32)
    b2 = beta.reshape(1, C).astype(jnp.float32)
    itemsize = jnp.dtype(x.dtype).itemsize
    pack = _sublane_pack(x.dtype)
    vmem_cap = _vmem_capacity_bytes()

    # Bytes per slab/tile element: in + out double-buffered at the real
    # itemsize, plus ~two tile-sized f32 temporaries inside the kernel.
    per_elem = 4 * itemsize + 8

    # ------------- fast path: whole (N, tc) channel slab resident ------------ #
    if not force_streaming:
        fast_budget = int(vmem_cap * 0.6)
        tc_fast = None
        if C % 128 == 0:
            for cand in (512, 384, 256, 128):
                if C % cand == 0 and N * cand * per_elem <= fast_budget:
                    tc_fast = cand
                    break
        elif N * C * per_elem <= fast_budget:
            tc_fast = C  # ragged channel count: one full-width tile
        if tc_fast is not None:
            needed = N * tc_fast * per_elem + (2 << 20)
            kernel = functools.partial(_bn_fast_kernel,
                                       inv_count=inv_count, eps=eps)
            out = pl.pallas_call(
                kernel,
                out_shape=jax.ShapeDtypeStruct((N, C), x.dtype),
                grid_spec=pltpu.PrefetchScalarGridSpec(
                    num_scalar_prefetch=0,
                    grid=(C // tc_fast,),
                    in_specs=[
                        pl.BlockSpec((N, tc_fast), lambda c: (0, c)),
                        pl.BlockSpec((1, tc_fast), lambda c: (0, c)),
                        pl.BlockSpec((1, tc_fast), lambda c: (0, c)),
                    ],
                    out_specs=pl.BlockSpec((N, tc_fast), lambda c: (0, c)),
                ),
                compiler_params=pltpu.CompilerParams(
                    dimension_semantics=("parallel",),
                    vmem_limit_bytes=int(min(vmem_cap, needed + (16 << 20))),
                ),
            )(x2, g2, b2)
            return out.reshape(B, L, C)

    # --------------- streaming path: stats call + normalize call ------------- #
    # Channel tile: largest lane-aligned divisor (single-TC chips gain nothing
    # from splitting C); ragged C uses the full width (legal: block == dim).
    if tc_override is not None:
        tc = tc_override
    elif C % 128 == 0:
        tc = 128
        for cand in (512, 384, 256, 128):
            if C % cand == 0:
                tc = cand
                break
    else:
        tc = C

    # Row tile: multiple of the dtype's sublane packing, as large as fits the
    # per-generation VMEM budget (big tiles amortize the ~0.35us/step cost).
    tile_budget = int(vmem_cap * 0.5)
    max_tn = _round_down(tile_budget // max(1, tc * per_elem), pack)
    if tn_override is not None:
        tn = tn_override
    else:
        tn = None
        for cand in (2048, 1024, 512, 256):
            if cand <= max_tn and N % cand == 0:
                tn = cand
                break
        if tn is None:
            tn = _round_up(N, pack) if N <= max_tn else min(max_tn, 2048)
    nt = pl.cdiv(N, tn)
    ragged = (N % tn) != 0  # handled in-kernel: no wrapper pad / output slice

    needed = tn * tc * per_elem + (2 << 20)
    vmem_limit = int(min(vmem_cap, needed + (16 << 20)))

    # Pass 1: per-channel scale/shift (a, b) via robust streamed statistics.
    stats_kernel = functools.partial(
        _bn_stats_kernel, n_rows=N, tn=tn, inv_count=inv_count, eps=eps,
        ragged=ragged)
    a_scale, b_shift = pl.pallas_call(
        stats_kernel,
        out_shape=(jax.ShapeDtypeStruct((1, C), jnp.float32),
                   jax.ShapeDtypeStruct((1, C), jnp.float32)),
        grid_spec=pltpu.PrefetchScalarGridSpec(
            num_scalar_prefetch=0,
            grid=(C // tc, nt),
            in_specs=[
                pl.BlockSpec((tn, tc), lambda c, n: (n, c)),
                pl.BlockSpec((1, tc), lambda c, n: (0, c)),
                pl.BlockSpec((1, tc), lambda c, n: (0, c)),
            ],
            out_specs=(pl.BlockSpec((1, tc), lambda c, n: (0, c)),
                       pl.BlockSpec((1, tc), lambda c, n: (0, c))),
            scratch_shapes=[pltpu.VMEM((1, tc), jnp.float32),   # running mean
                            pltpu.VMEM((1, tc), jnp.float32)],  # running M2
        ),
        compiler_params=pltpu.CompilerParams(
            dimension_semantics=("parallel", "arbitrary"),
            vmem_limit_bytes=vmem_limit,
        ),
    )(x2, g2, b2)

    # Pass 2: y = x*a + b, embarrassingly parallel over BOTH grid axes.
    out = pl.pallas_call(
        _bn_apply_kernel,
        out_shape=jax.ShapeDtypeStruct((N, C), x.dtype),
        grid_spec=pltpu.PrefetchScalarGridSpec(
            num_scalar_prefetch=0,
            grid=(C // tc, nt),
            in_specs=[
                pl.BlockSpec((tn, tc), lambda c, n: (n, c)),
                pl.BlockSpec((1, tc), lambda c, n: (0, c)),
                pl.BlockSpec((1, tc), lambda c, n: (0, c)),
            ],
            out_specs=pl.BlockSpec((tn, tc), lambda c, n: (n, c)),
        ),
        compiler_params=pltpu.CompilerParams(
            dimension_semantics=("parallel", "parallel"),
            vmem_limit_bytes=vmem_limit,
        ),
    )(x2, a_scale, b_shift)

    return out.reshape(B, L, C)


# ----------------------------- reference ------------------------------------ #


def _reference(x, gamma, beta, eps=EPS):
    B, L, C = x.shape
    if B == 1:
        return x
    xf = x.astype(jnp.float32)
    mean = jnp.mean(xf, axis=(0, 1), keepdims=True)
    var = jnp.mean((xf - mean) ** 2, axis=(0, 1), keepdims=True)
    y = (xf - mean) * lax.rsqrt(var + eps) * gamma.reshape(1, 1, C) \
        + beta.reshape(1, 1, C)
    return y.astype(x.dtype)


if __name__ == "__main__":
    key = jax.random.PRNGKey(0)

    def check(B, L, C, *, dtype=jnp.float32, random_affine=False,
              atol=3e-5, rtol=3e-5, **kw):
        k1, k2, k3 = jax.random.split(
            jax.random.fold_in(key, B * 100003 + L * 131 + C), 3)
        x = jax.random.normal(k1, (B, L, C), dtype=jnp.float32).astype(dtype)
        if random_affine:
            gamma = jax.random.normal(k2, (C,), dtype=jnp.float32)
            beta = jax.random.normal(k3, (C,), dtype=jnp.float32)
        else:
            gamma = jnp.ones((C,), dtype=jnp.float32)   # nn.BatchNorm1d init
            beta = jnp.zeros((C,), dtype=jnp.float32)
        y = jax.block_until_ready(batch_norm_temporal_1d(x, gamma, beta, **kw))
        y_ref = _reference(x, gamma, beta)
        assert y.shape == (B, L, C) and y.dtype == x.dtype
        assert jnp.allclose(y.astype(jnp.float32), y_ref.astype(jnp.float32),
                            atol=atol, rtol=rtol), \
            f"mismatch vs reference for shape {(B, L, C)} dtype={dtype} kw={kw}"
        return x

    # 1. Fast (resident-slab) path with a ragged channel count.
    x_small = check(2, 8, 32)

    # 2. Streaming path: stats + normalize calls, 4 row tiles (Chan merging).
    check(2, 64, 256, random_affine=True, force_streaming=True, tn_override=32)

    # 3. Streaming path with a ragged row count (masked last row tile).
    check(3, 25, 256, random_affine=True, force_streaming=True, tn_override=32)

    # 4. Streaming path with a ragged (non-multiple-of-128) channel dim.
    check(3, 16, 48, force_streaming=True, tn_override=16)

    # 5. bf16 input through the streaming path (dtype-aware sublane packing).
    check(2, 64, 128, dtype=jnp.bfloat16, random_affine=True,
          force_streaming=True, tn_override=32, atol=0.1, rtol=0.1)

    # 6. batch == 1: the module returns its input unchanged.
    x1 = x_small[:1]
    y1 = jax.block_until_ready(
        batch_norm_temporal_1d(x1, jnp.ones((32,), jnp.float32),
                               jnp.zeros((32,), jnp.float32)))
    assert jnp.array_equal(y1, x1)

    print("KERNEL_OK")
</pallas_src>

<mosaic_0001>
module attributes {stable_mosaic.version = 11 : i64} {
  func.func @_bn_fast_kernel(%arg0: i32, %arg1: memref<16x32xf32, #tpu.memory_space<vmem>>, %arg2: memref<1x32xf32, #tpu.memory_space<vmem>>, %arg3: memref<1x32xf32, #tpu.memory_space<vmem>>, %arg4: memref<16x32xf32, #tpu.memory_space<vmem>>) attributes {dimension_semantics = [#tpu.dimension_semantics<parallel>], iteration_bounds = array<i64: 1>, scalar_prefetch = 0 : i64, scratch_operands = 0 : i64, tpu.core_type = #tpu.core_type<tc>, window_params = [{transform_indices = @transform_0, window_bounds = array<i64: 16, 32>}, {transform_indices = @transform_1, window_bounds = array<i64: 1, 32>}, {transform_indices = @transform_2, window_bounds = array<i64: 1, 32>}, {transform_indices = @transform_3, window_bounds = array<i64: 16, 32>}]} {
    %c0 = arith.constant 0 : index
    %c0_0 = arith.constant 0 : index
    %0 = vector.load %arg1[%c0, %c0_0] : memref<16x32xf32, #tpu.memory_space<vmem>>, vector<16x32xf32>
    %cst = arith.constant dense<0.000000e+00> : vector<32xf32>
    %1 = vector.multi_reduction <add>, %0, %cst [0] : vector<16x32xf32> to vector<32xf32>
    %2 = vector.shape_cast %1 : vector<32xf32> to vector<1x32xf32>
    %cst_1 = arith.constant 6.250000e-02 : f32
    %3 = vector.broadcast %cst_1 : f32 to vector<1x32xf32>
    %4 = arith.mulf %2, %3 : vector<1x32xf32>
    %c0_2 = arith.constant 0 : index
    %c0_3 = arith.constant 0 : index
    %5 = vector.load %arg1[%c0_2, %c0_3] : memref<16x32xf32, #tpu.memory_space<vmem>>, vector<16x32xf32>
    %6 = vector.broadcast %4 : vector<1x32xf32> to vector<16x32xf32>
    %7 = arith.subf %5, %6 : vector<16x32xf32>
    %8 = arith.mulf %7, %7 : vector<16x32xf32>
    %cst_4 = arith.constant dense<0.000000e+00> : vector<32xf32>
    %9 = vector.multi_reduction <add>, %8, %cst_4 [0] : vector<16x32xf32> to vector<32xf32>
    %10 = vector.shape_cast %9 : vector<32xf32> to vector<1x32xf32>
    %cst_5 = arith.constant 6.250000e-02 : f32
    %11 = vector.broadcast %cst_5 : f32 to vector<1x32xf32>
    %12 = arith.mulf %10, %11 : vector<1x32xf32>
    %c0_6 = arith.constant 0 : index
    %c0_7 = arith.constant 0 : index
    %13 = vector.load %arg2[%c0_6, %c0_7] : memref<1x32xf32, #tpu.memory_space<vmem>>, vector<1x32xf32>
    %cst_8 = arith.constant 9.99999974E-6 : f32
    %14 = vector.broadcast %cst_8 : f32 to vector<1x32xf32>
    %15 = arith.addf %12, %14 : vector<1x32xf32>
    %16 = math.rsqrt %15 : vector<1x32xf32>
    %17 = arith.mulf %13, %16 : vector<1x32xf32>
    %c0_9 = arith.constant 0 : index
    %c0_10 = arith.constant 0 : index
    %18 = vector.load %arg3[%c0_9, %c0_10] : memref<1x32xf32, #tpu.memory_space<vmem>>, vector<1x32xf32>
    %19 = arith.mulf %4, %17 : vector<1x32xf32>
    %20 = arith.subf %18, %19 : vector<1x32xf32>
    %c0_11 = arith.constant 0 : index
    %c0_12 = arith.constant 0 : index
    %21 = vector.load %arg1[%c0_11, %c0_12] : memref<16x32xf32, #tpu.memory_space<vmem>>, vector<16x32xf32>
    %22 = vector.broadcast %17 : vector<1x32xf32> to vector<16x32xf32>
    %23 = arith.mulf %21, %22 : vector<16x32xf32>
    %24 = vector.broadcast %20 : vector<1x32xf32> to vector<16x32xf32>
    %25 = arith.addf %23, %24 : vector<16x32xf32>
    %c0_13 = arith.constant 0 : index
    %c0_14 = arith.constant 0 : index
    %26 = vector.load %arg4[%c0_13, %c0_14] : memref<16x32xf32, #tpu.memory_space<vmem>>, vector<16x32xf32>
    tpu.vector_store %arg4[%c0_13, %c0_14], %25 {strides = array<i32>} : memref<16x32xf32, #tpu.memory_space<vmem>>, vector<16x32xf32>,
    return
  }
  func.func @transform_0(%arg0: i32) -> (i32, i32) {
    %c0_i32 = arith.constant 0 : i32
    %c0_i32_0 = arith.constant 0 : i32
    return %c0_i32, %arg0 : i32, i32
  }
  func.func @transform_1(%arg0: i32) -> (i32, i32) {
    %c0_i32 = arith.constant 0 : i32
    %c0_i32_0 = arith.constant 0 : i32
    return %c0_i32, %arg0 : i32, i32
  }
  func.func @transform_2(%arg0: i32) -> (i32, i32) {
    %c0_i32 = arith.constant 0 : i32
    %c0_i32_0 = arith.constant 0 : i32
    return %c0_i32, %arg0 : i32, i32
  }
  func.func @transform_3(%arg0: i32) -> (i32, i32) {
    %c0_i32 = arith.constant 0 : i32
    %c0_i32_0 = arith.constant 0 : i32
    return %c0_i32, %arg0 : i32, i32
  }
}

</mosaic_0001>

<llo_original>
// kernel: tpu_custom_call.1
$region0: #{tpu_custom_call.1}
  #allocation0 [shape = 'u32[]', space=smem, size = 0x4, offset = 0x4, fixed_abs, tag = 'smem constant byte address 0x4 - core index']
  #allocation1 [shape = 'u32[144,128]{1,0:T(1,128)}', space=vmem, size = 0x12000, scoped, tag = 'internal scratch']
  %s0 = inlined_call_operand.hbm [shape: f32[16,32], index: 0, kind: input, shape index: {}]
  %s1 = inlined_call_operand.vmem [shape: f32[1,32], index: 1, kind: input, shape index: {}]
  %s2 = inlined_call_operand.vmem [shape: f32[1,32], index: 2, kind: input, shape index: {}]
  %s3 = inlined_call_operand.hbm [shape: f32[16,32], index: 3, kind: output, shape index: {}]
  %s4 = sld [smem:[#allocation0]]
  $region26: #{tpu_custom_call.1} parent=0
    _
  %s6 = ssub.s32 1, %s4
  %s7 = scalar_select 0, %s6, %s4
  $region1: #{tpu_custom_call.1} parent=0
    #allocation2 [shape = 'u8[8192]{0}', space=vmem, size = 0x2000, scoped, tag = 'input window, operand 0, single buffered']
    #allocation3 [shape = 's32[1]{0}', space=sflag, size = 0x4, scoped, tag = 'scoped memory for tpu_custom_call.1']
    #allocation4 [shape = 's32[1]{0}', space=sflag, size = 0x4, scoped, tag = 'scoped memory for tpu_custom_call.1']
    #allocation5 [shape = 'u8[8192]{0}', space=vmem, size = 0x2000, scoped, tag = 'output window, operand 0, single buffered']
    %8 = vsyncpa [#allocation3], 0
    %9 = vsyncpa [#allocation4], 0
    // Predicated region
    $region2: #{tpu_custom_call.1} parent=1 // pred_check
      _
    $region3: #{tpu_custom_call.1} parent=1 // pred_check_branch
      %11 = sbr.rel (0) target = $region5
    $region4: #{tpu_custom_call.1} parent=1 // pred_region
      %s13 = ssub.s32 256, 256
      %14 = vsyncadd [#allocation3], %s13
      %s15 = sshll.u32 [#allocation2], 4
      %s16 = int_to_ptr.vmem [resolvable:$true] %s15
      %21 = dma.hbm_to_vmem [thread:$0]  %s0, 256, %s16, [#allocation3], 128, 128, 8
    $region5: #{tpu_custom_call.1} parent=1 // pred_fallthru
      _
    // Predicated region
    $region6: #{tpu_custom_call.1} parent=1 // pred_check
      _
    $region7: #{tpu_custom_call.1} parent=1 // pred_check_branch
      %23 = sbr.rel (0) target = $region9
    $region8: #{tpu_custom_call.1} parent=1 // pred_region
      _
    $region9: #{tpu_custom_call.1} parent=1 // pred_fallthru
      _
    // Predicated region
    $region10: #{tpu_custom_call.1} parent=1 // pred_check
      _
    $region11: #{tpu_custom_call.1} parent=1 // pred_check_branch
      %25 = sbr.rel (0) target = $region13
    $region12: #{tpu_custom_call.1} parent=1 // pred_region
      _
    $region13: #{tpu_custom_call.1} parent=1 // pred_fallthru
      _
    // Predicated region
    $region14: #{tpu_custom_call.1} parent=1 // pred_check
      _
    $region15: #{tpu_custom_call.1} parent=1 // pred_check_branch
      %27 = sbr.rel (0) target = $region17
    $region16: #{tpu_custom_call.1} parent=1 // pred_region
      %28 = dma.done [#allocation3], 256
    $region17: #{tpu_custom_call.1} parent=1 // pred_fallthru
      _
    %v29 = vld [vmem:[#allocation2] sm:$0xff]
    %v30 = vld [vmem:[#allocation2 + $0x8] sm:$0xff]
    %vm31 = vcmask 261120
    %v32 = vsel %vm31, %v29, 0.0
    %v33 = vsel %vm31, %v30, 0.0
    %v34 = vadd.f32 %v32, %v33
    %v35 = vrot.slane %v34, 4
    %v36 = vadd.f32 %v34, %v35
    %v37 = vrot.slane %v36, 2
    %v38 = vadd.f32 %v36, %v37
    %v39 = vrot.slane %v38, 1
    %v40 = vadd.f32 %v38, %v39
    %v41 = vmul.f32 %v40, 0.0625
    %v42 = vsub.f32 %v29, %v41
    %v43 = vsub.f32 %v30, %v41
    %v44 = vmul.f32 %v42, %v42
    %v45 = vmul.f32 %v43, %v43
    %v46 = vsel %vm31, %v44, 0.0
    %v47 = vsel %vm31, %v45, 0.0
    %v48 = vadd.f32 %v46, %v47
    %v49 = vrot.slane %v48, 4
    %v50 = vadd.f32 %v48, %v49
    %v51 = vrot.slane %v50, 2
    %v52 = vadd.f32 %v50, %v51
    %v53 = vrot.slane %v52, 1
    %v54 = vadd.f32 %v52, %v53
    %v55 = vmul.f32 %v54, 0.0625
    %v56 = vld [vmem:[%s1] sm:$0x1]
    %v57 = vadd.f32 %v55, 1e-05
    %v58 = vrsqrt.pop %v57
    %v59 = vmul.f32 %v56, %v58
    %v60 = vld [vmem:[%s2] sm:$0x1]
    %v61 = vmul.f32 %v41, %v59
    %v62 = vsub.f32 %v60, %v61
    %v64 = vlaneseq
    %v65 = vshrl.u32 %v64, 7
    %v66 = vsub.s32 0, %v65
    %v67 = vrot.slane %v59, %v66
    %v69 = vmul.f32 %v29, %v67
    %v70 = vmul.f32 %v30, %v67
    %v72 = vlaneseq
    %v73 = vshrl.u32 %v72, 7
    %v74 = vsub.s32 0, %v73
    %v75 = vrot.slane %v62, %v74
    %v77 = vadd.f32 %v69, %v75
    %v78 = vadd.f32 %v70, %v75
    %79 = vst.msk [vmem:[#allocation5] sm:$0xff] %vm31, %v77
    %80 = vst.msk [vmem:[#allocation5 + $0x8] sm:$0xff] %vm31, %v78
    // Predicated region
    $region18: #{tpu_custom_call.1} parent=1 // pred_check
      _
    $region19: #{tpu_custom_call.1} parent=1 // pred_check_branch
      %82 = sbr.rel (0) target = $region21
    $region20: #{tpu_custom_call.1} parent=1 // pred_region
      %s84 = ssub.s32 256, 256
      %85 = vsyncadd [#allocation4], %s84
      %s86 = sshll.u32 [#allocation5], 4
      %s87 = int_to_ptr.vmem [resolvable:$true] %s86
      %92 = dma.vmem_to_hbm [thread:$0]  %s87, 256, %s3, [#allocation4], 128, 128, 8
    $region21: #{tpu_custom_call.1} parent=1 // pred_fallthru
      _
    // Predicated region
    $region22: #{tpu_custom_call.1} parent=1 // pred_check
      _
    $region23: #{tpu_custom_call.1} parent=1 // pred_check_branch
      %94 = sbr.rel (0) target = $region25
    $region24: #{tpu_custom_call.1} parent=1 // pred_region
      %95 = dma.done [#allocation4], 256
    $region25: #{tpu_custom_call.1} parent=1 // pred_fallthru
      _
    %96 = vsyncpa [#allocation3], 1
    %97 = vsyncpa [#allocation4], 1

</llo_original>
